<compile_context>
chip_gen: v5e
topology: v5e:2x2
jax: 0.10.0
libtpu: 0.0.40
codegen_flags: <defaults>
</compile_context>

<pallas_src>
import functools
import math

import jax
import jax.numpy as jnp
from jax.experimental import pallas as pl
from jax.experimental.pallas import tpu as pltpu


def _round_up(x, m):
    return ((x + m - 1) // m) * m


# --------------------------------------------------------------------------
# Kernel 1: support = x @ W      (one row tile per grid step, full contraction)
# --------------------------------------------------------------------------
def _support_kernel(x_ref, w_ref, o_ref):
    o_ref[...] = jnp.dot(
        x_ref[...], w_ref[...], preferred_element_type=jnp.float32
    ).astype(o_ref.dtype)


# --------------------------------------------------------------------------
# Kernel 2: out = adj @ support + bias     (grid = (rows i, contraction k))
# Output tile is resident across the whole k axis -> accumulate in place.
# --------------------------------------------------------------------------
def _aggregate_kernel(adj_ref, s_ref, b_ref, o_ref):
    k = pl.program_id(1)

    @pl.when(k == 0)
    def _():
        # Seed the resident f32 output tile with the broadcast bias.
        o_ref[...] = jnp.broadcast_to(b_ref[...], o_ref.shape)

    o_ref[...] += jnp.dot(
        adj_ref[...], s_ref[...], preferred_element_type=jnp.float32
    )


@functools.partial(jax.jit, static_argnames=("tm", "tk", "use_bf16"))
def graph_convolution(x, adj, weight, bias, *, tm=None, tk=None, use_bf16=False):
    """Dense GCN layer: adj @ (x @ weight) + bias, via two Pallas TPU kernels."""
    n, in_f = x.shape
    in_f2, out_f = weight.shape
    assert in_f == in_f2
    assert adj.shape == (n, n)

    compute_dtype = jnp.bfloat16 if use_bf16 else jnp.float32
    itemsize = jnp.dtype(compute_dtype).itemsize

    # Lane-dense padding of the feature dims (multiples of 128).
    in_p = _round_up(in_f, 128)
    out_p = _round_up(out_f, 128)

    # Tile sizes for the adj (rows, contraction) tiling.
    n128 = _round_up(n, 128)
    if tm is None:
        tm = min(512, n128)
    if tk is None:
        tk = min(512, n128)
    n_pad = _round_up(n, math.lcm(tm, tk))

    def pad2(a, shape, dtype):
        a = a.astype(dtype)
        if a.shape == shape:
            return a
        return jnp.zeros(shape, dtype).at[: a.shape[0], : a.shape[1]].set(a)

    # Zero padding contributes nothing to either matmul.
    x_p = pad2(x, (n_pad, in_p), compute_dtype)
    w_p = pad2(weight, (in_p, out_p), compute_dtype)
    adj_p = pad2(adj, (n_pad, n_pad), compute_dtype)
    b_p = pad2(bias[None, :], (1, out_p), jnp.float32)

    # ---------------- Kernel 1: support = x @ W ----------------
    vmem1 = 2 * (tm * in_p + in_p * out_p) * itemsize + 2 * tm * out_p * itemsize
    support = pl.pallas_call(
        _support_kernel,
        out_shape=jax.ShapeDtypeStruct((n_pad, out_p), compute_dtype),
        grid_spec=pltpu.PrefetchScalarGridSpec(
            num_scalar_prefetch=0,
            grid=(n_pad // tm,),
            in_specs=[
                pl.BlockSpec((tm, in_p), lambda i: (i, 0)),      # x rows
                pl.BlockSpec((in_p, out_p), lambda i: (0, 0)),   # weight (resident)
            ],
            out_specs=pl.BlockSpec((tm, out_p), lambda i: (i, 0)),
        ),
        compiler_params=pltpu.CompilerParams(
            dimension_semantics=("parallel",),
            vmem_limit_bytes=min(int(1.5 * vmem1) + (2 << 20), 64 * 1024 * 1024),
        ),
        cost_estimate=pl.CostEstimate(
            flops=2 * n * in_f * out_f,
            transcendentals=0,
            bytes_accessed=itemsize * (n * in_f + in_f * out_f + n * out_f),
        ),
    )(x_p, w_p)

    # ---------------- Kernel 2: out = adj @ support + bias ----------------
    vmem2 = (
        2 * tm * tk * itemsize        # adj tiles (double-buffered)
        + 2 * tk * out_p * itemsize   # support tiles
        + 2 * out_p * 4               # bias
        + 2 * tm * out_p * 4          # resident f32 output tiles
    )
    out_padded = pl.pallas_call(
        _aggregate_kernel,
        out_shape=jax.ShapeDtypeStruct((n_pad, out_p), jnp.float32),
        grid_spec=pltpu.PrefetchScalarGridSpec(
            num_scalar_prefetch=0,
            grid=(n_pad // tm, n_pad // tk),
            in_specs=[
                pl.BlockSpec((tm, tk), lambda i, k: (i, k)),      # adj
                pl.BlockSpec((tk, out_p), lambda i, k: (k, 0)),   # support
                pl.BlockSpec((1, out_p), lambda i, k: (0, 0)),    # bias
            ],
            out_specs=pl.BlockSpec((tm, out_p), lambda i, k: (i, 0)),
        ),
        compiler_params=pltpu.CompilerParams(
            dimension_semantics=("parallel", "arbitrary"),
            vmem_limit_bytes=min(int(1.5 * vmem2) + (2 << 20), 64 * 1024 * 1024),
        ),
        cost_estimate=pl.CostEstimate(
            flops=2 * n * n * out_f,
            transcendentals=0,
            bytes_accessed=itemsize * (n * n + n * out_p) + 4 * (out_p + n * out_p),
        ),
    )(adj_p, support, b_p)

    return out_padded[:n, :out_f].astype(x.dtype)


def init_gcn_params(key, in_features, out_features):
    """Mirrors GraphConvolution.reset_parameters():
    stdv = 1 / sqrt(weight.T.size(1)) = 1 / sqrt(in_features);
    weight, bias ~ U(-stdv, stdv)."""
    stdv = 1.0 / math.sqrt(in_features)
    kw, kb = jax.random.split(key)
    weight = jax.random.uniform(
        kw, (in_features, out_features), jnp.float32, minval=-stdv, maxval=stdv
    )
    bias = jax.random.uniform(
        kb, (out_features,), jnp.float32, minval=-stdv, maxval=stdv
    )
    return weight, bias


def _make_example(key, n, in_f, out_f):
    k_x, k_adj, k_p = jax.random.split(key, 3)
    x = jax.random.normal(k_x, (n, in_f), jnp.float32)
    # Deterministic symmetric-normalized adjacency (dense).
    a = (jax.random.uniform(k_adj, (n, n)) < 0.1).astype(jnp.float32)
    a = jnp.maximum(a, a.T) + jnp.eye(n, dtype=jnp.float32)
    deg = jnp.sum(a, axis=1)
    d_inv_sqrt = 1.0 / jnp.sqrt(deg)
    adj = a * d_inv_sqrt[:, None] * d_inv_sqrt[None, :]
    weight, bias = init_gcn_params(k_p, in_f, out_f)
    return x, adj, weight, bias


if __name__ == "__main__":
    key = jax.random.PRNGKey(0)
    k1, k2 = jax.random.split(key)

    ok = True

    # Case 1: original toy size (single grid point after padding).
    x, adj, w, b = _make_example(k1, 64, 32, 16)
    out = jax.block_until_ready(graph_convolution(x, adj, w, b))
    ref = adj @ (x @ w) + b[None, :]
    ok &= out.shape == (64, 16)
    ok &= bool(jnp.allclose(out, ref, atol=1e-4, rtol=1e-4))

    # Case 2: multi-tile grid (2x2) exercising the in-place k-accumulation
    # and row tiling.
    x2, adj2, w2, b2 = _make_example(k2, 256, 48, 20)
    out2 = jax.block_until_ready(
        graph_convolution(x2, adj2, w2, b2, tm=128, tk=128))
    ref2 = adj2 @ (x2 @ w2) + b2[None, :]
    ok &= out2.shape == (256, 20)
    ok &= bool(jnp.allclose(out2, ref2, atol=1e-4, rtol=1e-4))

    if ok:
        print("KERNEL_OK")
    else:
        print("KERNEL_MISMATCH")
</pallas_src>

<mosaic_0001>
module attributes {stable_mosaic.version = 11 : i64} {
  func.func @_aggregate_kernel(%arg0: i32, %arg1: i32, %arg2: memref<128x128xf32, #tpu.memory_space<vmem>>, %arg3: memref<128x128xf32, #tpu.memory_space<vmem>>, %arg4: memref<1x128xf32, #tpu.memory_space<vmem>>, %arg5: memref<128x128xf32, #tpu.memory_space<vmem>>) attributes {dimension_semantics = [#tpu.dimension_semantics<parallel>, #tpu.dimension_semantics<arbitrary>], iteration_bounds = array<i64: 1, 1>, scalar_prefetch = 0 : i64, scratch_operands = 0 : i64, tpu.core_type = #tpu.core_type<tc>, window_params = [{transform_indices = @transform_0, window_bounds = array<i64: 128, 128>}, {transform_indices = @transform_1, window_bounds = array<i64: 128, 128>}, {pipeline_mode = #tpu.pipeline_mode<synchronous>, transform_indices = @transform_2, window_bounds = array<i64: 1, 128>}, {transform_indices = @transform_3, window_bounds = array<i64: 128, 128>}]} {
    %c0_i32 = arith.constant 0 : i32
    %0 = arith.cmpi eq, %arg1, %c0_i32 : i32
    %1 = arith.extui %0 : i1 to i32
    %c0_i32_0 = arith.constant 0 : i32
    %2 = arith.cmpi ne, %1, %c0_i32_0 : i32
    scf.if %2 {
      %c0_8 = arith.constant 0 : index
      %c0_9 = arith.constant 0 : index
      %9 = vector.load %arg4[%c0_8, %c0_9] : memref<1x128xf32, #tpu.memory_space<vmem>>, vector<1x128xf32>
      %10 = vector.shape_cast %9 : vector<1x128xf32> to vector<1x128xf32>
      %11 = vector.broadcast %10 : vector<1x128xf32> to vector<128x128xf32>
      %c0_10 = arith.constant 0 : index
      %c0_11 = arith.constant 0 : index
      %12 = vector.load %arg5[%c0_10, %c0_11] : memref<128x128xf32, #tpu.memory_space<vmem>>, vector<128x128xf32>
      tpu.vector_store %arg5[%c0_10, %c0_11], %11 {strides = array<i32>} : memref<128x128xf32, #tpu.memory_space<vmem>>, vector<128x128xf32>,
    } else {
    }
    %c0 = arith.constant 0 : index
    %c0_1 = arith.constant 0 : index
    %3 = vector.load %arg5[%c0, %c0_1] : memref<128x128xf32, #tpu.memory_space<vmem>>, vector<128x128xf32>
    %c0_2 = arith.constant 0 : index
    %c0_3 = arith.constant 0 : index
    %4 = vector.load %arg2[%c0_2, %c0_3] : memref<128x128xf32, #tpu.memory_space<vmem>>, vector<128x128xf32>
    %c0_4 = arith.constant 0 : index
    %c0_5 = arith.constant 0 : index
    %5 = vector.load %arg3[%c0_4, %c0_5] : memref<128x128xf32, #tpu.memory_space<vmem>>, vector<128x128xf32>
    %cst = arith.constant dense<0.000000e+00> : vector<128x128xf32>
    %6 = tpu.matmul %4, %5, %cst {dimension_numbers = #tpu.dot_dimension_numbers<[1], [0], [0], [1], [0, 0, 1, 1], [], []>} : vector<128x128xf32>, vector<128x128xf32>, vector<128x128xf32> -> vector<128x128xf32>
    %7 = arith.addf %3, %6 : vector<128x128xf32>
    %c0_6 = arith.constant 0 : index
    %c0_7 = arith.constant 0 : index
    %8 = vector.load %arg5[%c0_6, %c0_7] : memref<128x128xf32, #tpu.memory_space<vmem>>, vector<128x128xf32>
    tpu.vector_store %arg5[%c0_6, %c0_7], %7 {strides = array<i32>} : memref<128x128xf32, #tpu.memory_space<vmem>>, vector<128x128xf32>,
    return
  }
  func.func @transform_0(%arg0: i32, %arg1: i32) -> (i32, i32) {
    %c0_i32 = arith.constant 0 : i32
    return %arg0, %arg1 : i32, i32
  }
  func.func @transform_1(%arg0: i32, %arg1: i32) -> (i32, i32) {
    %c0_i32 = arith.constant 0 : i32
    %c0_i32_0 = arith.constant 0 : i32
    return %arg1, %c0_i32 : i32, i32
  }
  func.func @transform_2(%arg0: i32, %arg1: i32) -> (i32, i32) {
    %c0_i32 = arith.constant 0 : i32
    %c0_i32_0 = arith.constant 0 : i32
    %c0_i32_1 = arith.constant 0 : i32
    return %c0_i32, %c0_i32_0 : i32, i32
  }
  func.func @transform_3(%arg0: i32, %arg1: i32) -> (i32, i32) {
    %c0_i32 = arith.constant 0 : i32
    %c0_i32_0 = arith.constant 0 : i32
    return %arg0, %c0_i32 : i32, i32
  }
}

module attributes {stable_mosaic.version = 11 : i64} {
  func.func @_support_kernel(%arg0: i32, %arg1: memref<128x128xf32, #tpu.memory_space<vmem>>, %arg2: memref<128x128xf32, #tpu.memory_space<vmem>>, %arg3: memref<128x128xf32, #tpu.memory_space<vmem>>) attributes {dimension_semantics = [#tpu.dimension_semantics<parallel>], iteration_bounds = array<i64: 1>, scalar_prefetch = 0 : i64, scratch_operands = 0 : i64, tpu.core_type = #tpu.core_type<tc>, window_params = [{transform_indices = @transform_0, window_bounds = array<i64: 128, 128>}, {pipeline_mode = #tpu.pipeline_mode<synchronous>, transform_indices = @transform_1, window_bounds = array<i64: 128, 128>}, {transform_indices = @transform_2, window_bounds = array<i64: 128, 128>}]} {
    %c0 = arith.constant 0 : index
    %c0_0 = arith.constant 0 : index
    %0 = vector.load %arg1[%c0, %c0_0] : memref<128x128xf32, #tpu.memory_space<vmem>>, vector<128x128xf32>
    %c0_1 = arith.constant 0 : index
    %c0_2 = arith.constant 0 : index
    %1 = vector.load %arg2[%c0_1, %c0_2] : memref<128x128xf32, #tpu.memory_space<vmem>>, vector<128x128xf32>
    %cst = arith.constant dense<0.000000e+00> : vector<128x128xf32>
    %2 = tpu.matmul %0, %1, %cst {dimension_numbers = #tpu.dot_dimension_numbers<[1], [0], [0], [1], [0, 0, 1, 1], [], []>} : vector<128x128xf32>, vector<128x128xf32>, vector<128x128xf32> -> vector<128x128xf32>
    %c0_3 = arith.constant 0 : index
    %c0_4 = arith.constant 0 : index
    %3 = vector.load %arg3[%c0_3, %c0_4] : memref<128x128xf32, #tpu.memory_space<vmem>>, vector<128x128xf32>
    tpu.vector_store %arg3[%c0_3, %c0_4], %2 {strides = array<i32>} : memref<128x128xf32, #tpu.memory_space<vmem>>, vector<128x128xf32>,
    return
  }
  func.func @transform_0(%arg0: i32) -> (i32, i32) {
    %c0_i32 = arith.constant 0 : i32
    %c0_i32_0 = arith.constant 0 : i32
    return %arg0, %c0_i32 : i32, i32
  }
  func.func @transform_1(%arg0: i32) -> (i32, i32) {
    %c0_i32 = arith.constant 0 : i32
    %c0_i32_0 = arith.constant 0 : i32
    %c0_i32_1 = arith.constant 0 : i32
    return %c0_i32, %c0_i32_0 : i32, i32
  }
  func.func @transform_2(%arg0: i32) -> (i32, i32) {
    %c0_i32 = arith.constant 0 : i32
    %c0_i32_0 = arith.constant 0 : i32
    return %arg0, %c0_i32 : i32, i32
  }
}

</mosaic_0001>

<llo_original>
// kernel: graph_convolution.3
$region0: #{graph_convolution.3}
  #allocation0 [shape = 'u32[]', space=smem, size = 0x4, offset = 0x4, fixed_abs, tag = 'smem constant byte address 0x4 - core index']
  #allocation1 [shape = 'u32[72,128]{1,0:T(1,128)}', space=vmem, size = 0x9000, scoped, tag = 'internal scratch']
  %s0 = inlined_call_operand.vmem [shape: f32[128,128], index: 0, kind: input, shape index: {}]
  %s1 = inlined_call_operand.vmem [shape: f32[128,128], index: 1, kind: input, shape index: {}]
  %s2 = inlined_call_operand.vmem [shape: f32[1,128], index: 2, kind: input, shape index: {}]
  %s3 = inlined_call_operand.vmem [shape: f32[128,128], index: 3, kind: output, shape index: {}]
  %s4 = sld [smem:[#allocation0]]
  $region26: #{graph_convolution.3} parent=0
    _
  %s6 = ssub.s32 1, %s4
  %s7 = scalar_select 0, %s6, %s4
  // Predicated region
  $region2: #{graph_convolution.3} parent=0 // pred_check
    _
  $region3: #{graph_convolution.3} parent=0 // pred_check_branch
    %9 = sbr.rel (0) target = $region5
  $region4: #{graph_convolution.3} parent=0 // pred_region
    _
  $region5: #{graph_convolution.3} parent=0 // pred_fallthru
    _
  // Predicated region
  $region6: #{graph_convolution.3} parent=0 // pred_check
    _
  $region7: #{graph_convolution.3} parent=0 // pred_check_branch
    %11 = sbr.rel (0) target = $region9
  $region8: #{graph_convolution.3} parent=0 // pred_region
    _
  $region9: #{graph_convolution.3} parent=0 // pred_fallthru
    _
  // Predicated region
  $region10: #{graph_convolution.3} parent=0 // pred_check
    _
  $region11: #{graph_convolution.3} parent=0 // pred_check_branch
    %13 = sbr.rel (0) target = $region13
  $region12: #{graph_convolution.3} parent=0 // pred_region
    _
  $region13: #{graph_convolution.3} parent=0 // pred_fallthru
    _
  %p14 = scmp.eq.s32.totalorder 0, 0
  // Predicated region
  $region14: #{graph_convolution.3} parent=0 // pred_check
    %p15 = pneg %p14
  $region15: #{graph_convolution.3} parent=0 // pred_check_branch
    %17 = sbr.rel (%p15) target = $region17
  $region16: #{graph_convolution.3} parent=0 // pred_region
    %v18 = vld [vmem:[%s2] sm:$0x1]
    %v20 = vperm.slane %v18, 0
    %22 = vst [vmem:[%s3] sm:$0xff] %v20
    %23 = vst [vmem:[%s3 + $0x8] sm:$0xff] %v20
    %24 = vst [vmem:[%s3 + $0x10] sm:$0xff] %v20
    %25 = vst [vmem:[%s3 + $0x18] sm:$0xff] %v20
    %26 = vst [vmem:[%s3 + $0x20] sm:$0xff] %v20
    %27 = vst [vmem:[%s3 + $0x28] sm:$0xff] %v20
    %28 = vst [vmem:[%s3 + $0x30] sm:$0xff] %v20
    %29 = vst [vmem:[%s3 + $0x38] sm:$0xff] %v20
    %30 = vst [vmem:[%s3 + $0x40] sm:$0xff] %v20
    %31 = vst [vmem:[%s3 + $0x48] sm:$0xff] %v20
    %32 = vst [vmem:[%s3 + $0x50] sm:$0xff] %v20
    %33 = vst [vmem:[%s3 + $0x58] sm:$0xff] %v20
    %34 = vst [vmem:[%s3 + $0x60] sm:$0xff] %v20
    %35 = vst [vmem:[%s3 + $0x68] sm:$0xff] %v20
    %36 = vst [vmem:[%s3 + $0x70] sm:$0xff] %v20
    %37 = vst [vmem:[%s3 + $0x78] sm:$0xff] %v20
  $region17: #{graph_convolution.3} parent=0 // pred_fallthru
    _
  %v38 = vld [vmem:[%s3] sm:$0xff]
  %v39 = vld [vmem:[%s3 + $0x8] sm:$0xff]
  %v40 = vld [vmem:[%s3 + $0x10] sm:$0xff]
  %v41 = vld [vmem:[%s3 + $0x18] sm:$0xff]
  %v42 = vld [vmem:[%s3 + $0x20] sm:$0xff]
  %v43 = vld [vmem:[%s3 + $0x28] sm:$0xff]
  %v44 = vld [vmem:[%s3 + $0x30] sm:$0xff]
  %v45 = vld [vmem:[%s3 + $0x38] sm:$0xff]
  %v46 = vld [vmem:[%s3 + $0x40] sm:$0xff]
  %v47 = vld [vmem:[%s3 + $0x48] sm:$0xff]
  %v48 = vld [vmem:[%s3 + $0x50] sm:$0xff]
  %v49 = vld [vmem:[%s3 + $0x58] sm:$0xff]
  %v50 = vld [vmem:[%s3 + $0x60] sm:$0xff]
  %v51 = vld [vmem:[%s3 + $0x68] sm:$0xff]
  %v52 = vld [vmem:[%s3 + $0x70] sm:$0xff]
  %v53 = vld [vmem:[%s3 + $0x78] sm:$0xff]
  %v54 = vld [vmem:[%s0] sm:$0xff]
  %v55 = vld [vmem:[%s0 + $0x8] sm:$0xff]
  %v56 = vld [vmem:[%s0 + $0x10] sm:$0xff]
  %v57 = vld [vmem:[%s0 + $0x18] sm:$0xff]
  %v58 = vld [vmem:[%s0 + $0x20] sm:$0xff]
  %v59 = vld [vmem:[%s0 + $0x28] sm:$0xff]
  %v60 = vld [vmem:[%s0 + $0x30] sm:$0xff]
  %v61 = vld [vmem:[%s0 + $0x38] sm:$0xff]
  %v62 = vld [vmem:[%s0 + $0x40] sm:$0xff]
  %v63 = vld [vmem:[%s0 + $0x48] sm:$0xff]
  %v64 = vld [vmem:[%s0 + $0x50] sm:$0xff]
  %v65 = vld [vmem:[%s0 + $0x58] sm:$0xff]
  %v66 = vld [vmem:[%s0 + $0x60] sm:$0xff]
  %v67 = vld [vmem:[%s0 + $0x68] sm:$0xff]
  %v68 = vld [vmem:[%s0 + $0x70] sm:$0xff]
  %v69 = vld [vmem:[%s0 + $0x78] sm:$0xff]
  %v70 = vld [vmem:[%s1] sm:$0xff]
  %v71 = vld [vmem:[%s1 + $0x8] sm:$0xff]
  %v72 = vld [vmem:[%s1 + $0x10] sm:$0xff]
  %v73 = vld [vmem:[%s1 + $0x18] sm:$0xff]
  %v74 = vld [vmem:[%s1 + $0x20] sm:$0xff]
  %v75 = vld [vmem:[%s1 + $0x28] sm:$0xff]
  %v76 = vld [vmem:[%s1 + $0x30] sm:$0xff]
  %v77 = vld [vmem:[%s1 + $0x38] sm:$0xff]
  %v78 = vld [vmem:[%s1 + $0x40] sm:$0xff]
  %v79 = vld [vmem:[%s1 + $0x48] sm:$0xff]
  %v80 = vld [vmem:[%s1 + $0x50] sm:$0xff]
  %v81 = vld [vmem:[%s1 + $0x58] sm:$0xff]
  %v82 = vld [vmem:[%s1 + $0x60] sm:$0xff]
  %v83 = vld [vmem:[%s1 + $0x68] sm:$0xff]
  %v84 = vld [vmem:[%s1 + $0x70] sm:$0xff]
  %v85 = vld [vmem:[%s1 + $0x78] sm:$0xff]
  %86 = vmatpush.msra.mxu0 %v85
  %87 = vmatpush.msra.mxu0 %v84
  %88 = vmatpush.msra.mxu0 %v83
  %89 = vmatpush.msra.mxu0 %v82
  %90 = vmatpush.msra.mxu0 %v81
  %91 = vmatpush.msra.mxu0 %v80
  %92 = vmatpush.msra.mxu0 %v79
  %93 = vmatpush.msra.mxu0 %v78
  %94 = vmatpush.msra.mxu0 %v77
  %95 = vmatpush.msra.mxu0 %v76
  %96 = vmatpush.msra.mxu0 %v75
  %97 = vmatpush.msra.mxu0 %v74
  %98 = vmatpush.msra.mxu0 %v73
  %99 = vmatpush.msra.mxu0 %v72
  %100 = vmatpush.msra.mxu0 %v71
  %101 = vmatpush.msra.mxu0 %v70
  %102 = vmatmul.f32.gmra.mxu0 %v54
  %v103 = vpop.f32.mrf.mxu0
  %v104 = vadd.f32 0.0, %v103
  %105 = vmatmul.f32.gmra.mxu0 %v55
  %v106 = vpop.f32.mrf.mxu0
  %v107 = vadd.f32 0.0, %v106
  %108 = vmatmul.f32.gmra.mxu0 %v56
  %v109 = vpop.f32.mrf.mxu0
  %v110 = vadd.f32 0.0, %v109
  %111 = vmatmul.f32.gmra.mxu0 %v57
  %v112 = vpop.f32.mrf.mxu0
  %v113 = vadd.f32 0.0, %v112
  %114 = vmatmul.f32.gmra.mxu0 %v58
  %v115 = vpop.f32.mrf.mxu0
  %v116 = vadd.f32 0.0, %v115
  %117 = vmatmul.f32.gmra.mxu0 %v59
  %v118 = vpop.f32.mrf.mxu0
  %v119 = vadd.f32 0.0, %v118
  %120 = vmatmul.f32.gmra.mxu0 %v60
  %v121 = vpop.f32.mrf.mxu0
  %v122 = vadd.f32 0.0, %v121
  %123 = vmatmul.f32.gmra.mxu0 %v61
  %v124 = vpop.f32.mrf.mxu0
  %v125 = vadd.f32 0.0, %v124
  %126 = vmatmul.f32.gmra.mxu0 %v62
  %v127 = vpop.f32.mrf.mxu0
  %v128 = vadd.f32 0.0, %v127
  %129 = vmatmul.f32.gmra.mxu0 %v63
  %v130 = vpop.f32.mrf.mxu0
  %v131 = vadd.f32 0.0, %v130
  %132 = vmatmul.f32.gmra.mxu0 %v64
  %v133 = vpop.f32.mrf.mxu0
  %v134 = vadd.f32 0.0, %v133
  %135 = vmatmul.f32.gmra.mxu0 %v65
  %v136 = vpop.f32.mrf.mxu0
  %v137 = vadd.f32 0.0, %v136
  %138 = vmatmul.f32.gmra.mxu0 %v66
  %v139 = vpop.f32.mrf.mxu0
  %v140 = vadd.f32 0.0, %v139
  %141 = vmatmul.f32.gmra.mxu0 %v67
  %v142 = vpop.f32.mrf.mxu0
  %v143 = vadd.f32 0.0, %v142
  %144 = vmatmul.f32.gmra.mxu0 %v68
  %v145 = vpop.f32.mrf.mxu0
  %v146 = vadd.f32 0.0, %v145
  %147 = vmatmul.f32.gmra.mxu0 %v69
  %v148 = vpop.f32.mrf.mxu0
  %v149 = vadd.f32 0.0, %v148
  %150 = vdwg.mxu0
  %v151 = vadd.f32 %v38, %v104
  %v152 = vadd.f32 %v39, %v107
  %v153 = vadd.f32 %v40, %v110
  %v154 = vadd.f32 %v41, %v113
  %v155 = vadd.f32 %v42, %v116
  %v156 = vadd.f32 %v43, %v119
  %v157 = vadd.f32 %v44, %v122
  %v158 = vadd.f32 %v45, %v125
  %v159 = vadd.f32 %v46, %v128
  %v160 = vadd.f32 %v47, %v131
  %v161 = vadd.f32 %v48, %v134
  %v162 = vadd.f32 %v49, %v137
  %v163 = vadd.f32 %v50, %v140
  %v164 = vadd.f32 %v51, %v143
  %v165 = vadd.f32 %v52, %v146
  %v166 = vadd.f32 %v53, %v149
  %167 = vst [vmem:[%s3] sm:$0xff] %v151
  %168 = vst [vmem:[%s3 + $0x8] sm:$0xff] %v152
  %169 = vst [vmem:[%s3 + $0x10] sm:$0xff] %v153
  %170 = vst [vmem:[%s3 + $0x18] sm:$0xff] %v154
  %171 = vst [vmem:[%s3 + $0x20] sm:$0xff] %v155
  %172 = vst [vmem:[%s3 + $0x28] sm:$0xff] %v156
  %173 = vst [vmem:[%s3 + $0x30] sm:$0xff] %v157
  %174 = vst [vmem:[%s3 + $0x38] sm:$0xff] %v158
  %175 = vst [vmem:[%s3 + $0x40] sm:$0xff] %v159
  %176 = vst [vmem:[%s3 + $0x48] sm:$0xff] %v160
  %177 = vst [vmem:[%s3 + $0x50] sm:$0xff] %v161
  %178 = vst [vmem:[%s3 + $0x58] sm:$0xff] %v162
  %179 = vst [vmem:[%s3 + $0x60] sm:$0xff] %v163
  %180 = vst [vmem:[%s3 + $0x68] sm:$0xff] %v164
  %181 = vst [vmem:[%s3 + $0x70] sm:$0xff] %v165
  %182 = vst [vmem:[%s3 + $0x78] sm:$0xff] %v166
  // Predicated region
  $region18: #{graph_convolution.3} parent=0 // pred_check
    _
  $region19: #{graph_convolution.3} parent=0 // pred_check_branch
    %184 = sbr.rel (0) target = $region21
  $region20: #{graph_convolution.3} parent=0 // pred_region
    _
  $region21: #{graph_convolution.3} parent=0 // pred_fallthru
    _
  // Predicated region
  $region22: #{graph_convolution.3} parent=0 // pred_check
    _
  $region23: #{graph_convolution.3} parent=0 // pred_check_branch
    %186 = sbr.rel (0) target = $region25
  $region24: #{graph_convolution.3} parent=0 // pred_region
    _
  $region25: #{graph_convolution.3} parent=0 // pred_fallthru
    _

// kernel: graph_convolution.2
$region0: #{graph_convolution.2}
  #allocation0 [shape = 'u32[]', space=smem, size = 0x4, offset = 0x4, fixed_abs, tag = 'smem constant byte address 0x4 - core index']
  #allocation1 [shape = 'u32[72,128]{1,0:T(1,128)}', space=vmem, size = 0x9000, scoped, tag = 'internal scratch']
  %s0 = inlined_call_operand.vmem [shape: f32[128,128], index: 0, kind: input, shape index: {}]
  %s1 = inlined_call_operand.vmem [shape: f32[128,128], index: 1, kind: input, shape index: {}]
  %s2 = inlined_call_operand.vmem [shape: f32[128,128], index: 2, kind: output, shape index: {}]
  %s3 = sld [smem:[#allocation0]]
  $region18: #{graph_convolution.2} parent=0
    _
  %s5 = ssub.s32 1, %s3
  %s6 = scalar_select 0, %s5, %s3
  // Predicated region
  $region2: #{graph_convolution.2} parent=0 // pred_check
    _
  $region3: #{graph_convolution.2} parent=0 // pred_check_branch
    %8 = sbr.rel (0) target = $region5
  $region4: #{graph_convolution.2} parent=0 // pred_region
    _
  $region5: #{graph_convolution.2} parent=0 // pred_fallthru
    _
  // Predicated region
  $region6: #{graph_convolution.2} parent=0 // pred_check
    _
  $region7: #{graph_convolution.2} parent=0 // pred_check_branch
    %10 = sbr.rel (0) target = $region9
  $region8: #{graph_convolution.2} parent=0 // pred_region
    _
  $region9: #{graph_convolution.2} parent=0 // pred_fallthru
    _
  %v11 = vld [vmem:[%s0] sm:$0xff]
  %v12 = vld [vmem:[%s0 + $0x8] sm:$0xff]
  %v13 = vld [vmem:[%s0 + $0x10] sm:$0xff]
  %v14 = vld [vmem:[%s0 + $0x18] sm:$0xff]
  %v15 = vld [vmem:[%s0 + $0x20] sm:$0xff]
  %v16 = vld [vmem:[%s0 + $0x28] sm:$0xff]
  %v17 = vld [vmem:[%s0 + $0x30] sm:$0xff]
  %v18 = vld [vmem:[%s0 + $0x38] sm:$0xff]
  %v19 = vld [vmem:[%s0 + $0x40] sm:$0xff]
  %v20 = vld [vmem:[%s0 + $0x48] sm:$0xff]
  %v21 = vld [vmem:[%s0 + $0x50] sm:$0xff]
  %v22 = vld [vmem:[%s0 + $0x58] sm:$0xff]
  %v23 = vld [vmem:[%s0 + $0x60] sm:$0xff]
  %v24 = vld [vmem:[%s0 + $0x68] sm:$0xff]
  %v25 = vld [vmem:[%s0 + $0x70] sm:$0xff]
  %v26 = vld [vmem:[%s0 + $0x78] sm:$0xff]
  %v27 = vld [vmem:[%s1] sm:$0xff]
  %v28 = vld [vmem:[%s1 + $0x8] sm:$0xff]
  %v29 = vld [vmem:[%s1 + $0x10] sm:$0xff]
  %v30 = vld [vmem:[%s1 + $0x18] sm:$0xff]
  %v31 = vld [vmem:[%s1 + $0x20] sm:$0xff]
  %v32 = vld [vmem:[%s1 + $0x28] sm:$0xff]
  %v33 = vld [vmem:[%s1 + $0x30] sm:$0xff]
  %v34 = vld [vmem:[%s1 + $0x38] sm:$0xff]
  %v35 = vld [vmem:[%s1 + $0x40] sm:$0xff]
  %v36 = vld [vmem:[%s1 + $0x48] sm:$0xff]
  %v37 = vld [vmem:[%s1 + $0x50] sm:$0xff]
  %v38 = vld [vmem:[%s1 + $0x58] sm:$0xff]
  %v39 = vld [vmem:[%s1 + $0x60] sm:$0xff]
  %v40 = vld [vmem:[%s1 + $0x68] sm:$0xff]
  %v41 = vld [vmem:[%s1 + $0x70] sm:$0xff]
  %v42 = vld [vmem:[%s1 + $0x78] sm:$0xff]
  %43 = vmatpush.msra.mxu0 %v42
  %44 = vmatpush.msra.mxu0 %v41
  %45 = vmatpush.msra.mxu0 %v40
  %46 = vmatpush.msra.mxu0 %v39
  %47 = vmatpush.msra.mxu0 %v38
  %48 = vmatpush.msra.mxu0 %v37
  %49 = vmatpush.msra.mxu0 %v36
  %50 = vmatpush.msra.mxu0 %v35
  %51 = vmatpush.msra.mxu0 %v34
  %52 = vmatpush.msra.mxu0 %v33
  %53 = vmatpush.msra.mxu0 %v32
  %54 = vmatpush.msra.mxu0 %v31
  %55 = vmatpush.msra.mxu0 %v30
  %56 = vmatpush.msra.mxu0 %v29
  %57 = vmatpush.msra.mxu0 %v28
  %58 = vmatpush.msra.mxu0 %v27
  %59 = vmatmul.f32.gmra.mxu0 %v11
  %v60 = vpop.f32.mrf.mxu0
  %v61 = vadd.f32 0.0, %v60
  %62 = vmatmul.f32.gmra.mxu0 %v12
  %v63 = vpop.f32.mrf.mxu0
  %v64 = vadd.f32 0.0, %v63
  %65 = vmatmul.f32.gmra.mxu0 %v13
  %v66 = vpop.f32.mrf.mxu0
  %v67 = vadd.f32 0.0, %v66
  %68 = vmatmul.f32.gmra.mxu0 %v14
  %v69 = vpop.f32.mrf.mxu0
  %v70 = vadd.f32 0.0, %v69
  %71 = vmatmul.f32.gmra.mxu0 %v15
  %v72 = vpop.f32.mrf.mxu0
  %v73 = vadd.f32 0.0, %v72
  %74 = vmatmul.f32.gmra.mxu0 %v16
  %v75 = vpop.f32.mrf.mxu0
  %v76 = vadd.f32 0.0, %v75
  %77 = vmatmul.f32.gmra.mxu0 %v17
  %v78 = vpop.f32.mrf.mxu0
  %v79 = vadd.f32 0.0, %v78
  %80 = vmatmul.f32.gmra.mxu0 %v18
  %v81 = vpop.f32.mrf.mxu0
  %v82 = vadd.f32 0.0, %v81
  %83 = vmatmul.f32.gmra.mxu0 %v19
  %v84 = vpop.f32.mrf.mxu0
  %v85 = vadd.f32 0.0, %v84
  %86 = vmatmul.f32.gmra.mxu0 %v20
  %v87 = vpop.f32.mrf.mxu0
  %v88 = vadd.f32 0.0, %v87
  %89 = vmatmul.f32.gmra.mxu0 %v21
  %v90 = vpop.f32.mrf.mxu0
  %v91 = vadd.f32 0.0, %v90
  %92 = vmatmul.f32.gmra.mxu0 %v22
  %v93 = vpop.f32.mrf.mxu0
  %v94 = vadd.f32 0.0, %v93
  %95 = vmatmul.f32.gmra.mxu0 %v23
  %v96 = vpop.f32.mrf.mxu0
  %v97 = vadd.f32 0.0, %v96
  %98 = vmatmul.f32.gmra.mxu0 %v24
  %v99 = vpop.f32.mrf.mxu0
  %v100 = vadd.f32 0.0, %v99
  %101 = vmatmul.f32.gmra.mxu0 %v25
  %v102 = vpop.f32.mrf.mxu0
  %v103 = vadd.f32 0.0, %v102
  %104 = vmatmul.f32.gmra.mxu0 %v26
  %v105 = vpop.f32.mrf.mxu0
  %v106 = vadd.f32 0.0, %v105
  %107 = vdwg.mxu0
  %108 = vst [vmem:[%s2] sm:$0xff] %v61
  %109 = vst [vmem:[%s2 + $0x8] sm:$0xff] %v64
  %110 = vst [vmem:[%s2 + $0x10] sm:$0xff] %v67
  %111 = vst [vmem:[%s2 + $0x18] sm:$0xff] %v70
  %112 = vst [vmem:[%s2 + $0x20] sm:$0xff] %v73
  %113 = vst [vmem:[%s2 + $0x28] sm:$0xff] %v76
  %114 = vst [vmem:[%s2 + $0x30] sm:$0xff] %v79
  %115 = vst [vmem:[%s2 + $0x38] sm:$0xff] %v82
  %116 = vst [vmem:[%s2 + $0x40] sm:$0xff] %v85
  %117 = vst [vmem:[%s2 + $0x48] sm:$0xff] %v88
  %118 = vst [vmem:[%s2 + $0x50] sm:$0xff] %v91
  %119 = vst [vmem:[%s2 + $0x58] sm:$0xff] %v94
  %120 = vst [vmem:[%s2 + $0x60] sm:$0xff] %v97
  %121 = vst [vmem:[%s2 + $0x68] sm:$0xff] %v100
  %122 = vst [vmem:[%s2 + $0x70] sm:$0xff] %v103
  %123 = vst [vmem:[%s2 + $0x78] sm:$0xff] %v106
  // Predicated region
  $region10: #{graph_convolution.2} parent=0 // pred_check
    _
  $region11: #{graph_convolution.2} parent=0 // pred_check_branch
    %125 = sbr.rel (0) target = $region13
  $region12: #{graph_convolution.2} parent=0 // pred_region
    _
  $region13: #{graph_convolution.2} parent=0 // pred_fallthru
    _
  // Predicated region
  $region14: #{graph_convolution.2} parent=0 // pred_check
    _
  $region15: #{graph_convolution.2} parent=0 // pred_check_branch
    %127 = sbr.rel (0) target = $region17
  $region16: #{graph_convolution.2} parent=0 // pred_region
    _
  $region17: #{graph_convolution.2} parent=0 // pred_fallthru
    _

</llo_original>
